<compile_context>
chip_gen: v6e
topology: v6e:2x2x1
jax: 0.10.0
libtpu: 0.0.40
codegen_flags: <defaults>
</compile_context>

<pallas_src>
import functools

import jax
import jax.numpy as jnp
from jax.experimental import pallas as pl
from jax.experimental.pallas import tpu as pltpu


def _round_up(n: int, m: int) -> int:
    return ((n + m - 1) // m) * m


def _fir_ccf_kernel(x_ref, wf_ref, bf_ref, w1_ref, b1_ref, w2_ref, b2_ref, out_ref):
    """Fused: (features for all classes in one lane-dense matmul) -> MLP head."""
    x = x_ref[...]                                              # (TILE_B, D_in_p) bf16

    # V = concat_c(x @ wf[c] + bf[c])  ==  x @ wf_cat + bf_cat  (single MXU stream)
    V = jnp.dot(x, wf_ref[...], preferred_element_type=jnp.float32) + bf_ref[...]

    # classifier: Linear -> ReLU -> Linear  (bf16 matmuls, f32 accum/epilogue)
    h = jnp.dot(V.astype(jnp.bfloat16), w1_ref[...],
                preferred_element_type=jnp.float32) + b1_ref[...]
    h = jnp.maximum(h, 0.0)                                     # ReLU(inplace=True)
    out = jnp.dot(h.astype(jnp.bfloat16), w2_ref[...],
                  preferred_element_type=jnp.float32) + b2_ref[...]
    out_ref[...] = out.astype(out_ref.dtype)


def _pick_tile_b(B: int, D_in_p: int, d_cat_p: int, hid_p: int, out_p: int,
                 vmem_budget: int = 24 << 20) -> int:
    """Largest batch tile (mult of 8, <= round_up(B,8), <= 512) fitting VMEM budget."""
    resident = (2 * (D_in_p * d_cat_p + d_cat_p * hid_p + hid_p * out_p)   # bf16 weights
                + 4 * (d_cat_p + hid_p + out_p))                           # f32 biases
    cap = min(512, _round_up(B, 8))
    for t in (512, 384, 256, 192, 128, 96, 64, 32, 16, 8):
        if t > cap:
            continue
        per_step = t * (2 * (D_in_p * 2)        # x tile, double-buffered bf16
                        + 2 * (out_p * 4)       # out tile, double-buffered f32
                        + 4 * d_cat_p           # V intermediate (f32)
                        + 4 * hid_p)            # h intermediate (f32)
        if resident + per_step <= vmem_budget:
            return t
    return 8


@functools.partial(jax.jit, static_argnames=("num_classes", "num_FIRs"))
def fir_ccf_forward(x_nchw, params, *, num_classes: int, num_FIRs: int):
    """Host-side wrapper. x_nchw: (B, C, H, W) float32."""
    B = x_nchw.shape[0]
    x_flat = x_nchw.reshape(B, -1)
    D_in = x_flat.shape[1]

    feat_dim = 16 * num_FIRs
    d_cat = feat_dim * num_classes
    hidden = 64

    # ---- padded, hardware-tile-friendly shapes -------------------------------
    D_in_p = _round_up(D_in, 128)
    d_cat_p = _round_up(d_cat, 128)
    hid_p = _round_up(hidden, 128)
    out_p = _round_up(num_classes, 128)
    TILE_B = _pick_tile_b(B, D_in_p, d_cat_p, hid_p, out_p)
    B_p = _round_up(B, TILE_B)

    # ---- fold per-class feature weights into one lane-dense matrix -----------
    wf = params["wf"]                                     # (C, D_in, feat_dim)
    bf = params["bf"]                                     # (C, 1, feat_dim)
    wf_cat = jnp.transpose(wf, (1, 0, 2)).reshape(D_in, d_cat)   # concat order = class-major
    bf_cat = bf.reshape(1, d_cat)

    # ---- zero-pad (inert: padded rows/cols contribute nothing) ---------------
    x_pad = jnp.zeros((B_p, D_in_p), jnp.bfloat16).at[:B, :D_in].set(
        x_flat.astype(jnp.bfloat16))
    wf_pad = jnp.zeros((D_in_p, d_cat_p), jnp.bfloat16).at[:D_in, :d_cat].set(
        wf_cat.astype(jnp.bfloat16))
    bf_pad = jnp.zeros((1, d_cat_p), jnp.float32).at[:, :d_cat].set(bf_cat)
    w1_pad = jnp.zeros((d_cat_p, hid_p), jnp.bfloat16).at[:d_cat, :hidden].set(
        params["w1"].astype(jnp.bfloat16))
    b1_pad = jnp.zeros((1, hid_p), jnp.float32).at[:, :hidden].set(params["b1"])
    w2_pad = jnp.zeros((hid_p, out_p), jnp.bfloat16).at[:hidden, :num_classes].set(
        params["w2"].astype(jnp.bfloat16))
    b2_pad = jnp.zeros((1, out_p), jnp.float32).at[:, :num_classes].set(params["b2"])

    grid = (B_p // TILE_B,)

    in_specs = [
        pl.BlockSpec((TILE_B, D_in_p), lambda i: (i, 0)),        # x: batch-tiled, pipelined
        pl.BlockSpec((D_in_p, d_cat_p), lambda i: (0, 0)),       # wf_cat: VMEM-resident
        pl.BlockSpec((1, d_cat_p), lambda i: (0, 0)),            # bf_cat: resident
        pl.BlockSpec((d_cat_p, hid_p), lambda i: (0, 0)),        # w1: resident
        pl.BlockSpec((1, hid_p), lambda i: (0, 0)),              # b1: resident
        pl.BlockSpec((hid_p, out_p), lambda i: (0, 0)),          # w2: resident
        pl.BlockSpec((1, out_p), lambda i: (0, 0)),              # b2: resident
    ]
    out_specs = pl.BlockSpec((TILE_B, out_p), lambda i: (i, 0))

    flops = 2 * B_p * (D_in_p * d_cat_p + d_cat_p * hid_p + hid_p * out_p)
    bytes_accessed = (
        x_pad.size * 2 + wf_pad.size * 2 + w1_pad.size * 2 + w2_pad.size * 2
        + bf_pad.size * 4 + b1_pad.size * 4 + b2_pad.size * 4
        + B_p * out_p * 4
    )

    out_pad = pl.pallas_call(
        _fir_ccf_kernel,
        out_shape=jax.ShapeDtypeStruct((B_p, out_p), jnp.float32),
        grid=grid,
        in_specs=in_specs,
        out_specs=out_specs,
        compiler_params=pltpu.CompilerParams(
            dimension_semantics=("parallel",),      # shard batch over 2 TCs on v7x
            vmem_limit_bytes=64 << 20,
        ),
        cost_estimate=pl.CostEstimate(
            flops=flops, transcendentals=0, bytes_accessed=bytes_accessed),
    )(x_pad, wf_pad, bf_pad, w1_pad, b1_pad, w2_pad, b2_pad)

    return out_pad[:B, :num_classes]


def init_params(key, *, d_in: int, num_classes: int, num_FIRs: int):
    """Deterministic synthetic parameters (no checkpoint load)."""
    feat_dim = 16 * num_FIRs
    d_cat = feat_dim * num_classes
    ks = jax.random.split(key, 6)
    scale = 0.02
    params = {
        # stand-in BCBLearner feature projections, stacked per class
        "wf": scale * jax.random.normal(ks[0], (num_classes, d_in, feat_dim), jnp.float32),
        "bf": scale * jax.random.normal(ks[1], (num_classes, 1, feat_dim), jnp.float32),
        # classifier: Linear(16*num_FIRs*num_classes, 64) -> ReLU -> Linear(64, num_classes)
        "w1": scale * jax.random.normal(ks[2], (d_cat, 64), jnp.float32),
        "b1": scale * jax.random.normal(ks[3], (1, 64), jnp.float32),
        "w2": scale * jax.random.normal(ks[4], (64, num_classes), jnp.float32),
        "b2": scale * jax.random.normal(ks[5], (1, num_classes), jnp.float32),
    }
    return params


def _reference_forward(x_nchw, params, *, num_classes, num_FIRs):
    """Pure-JAX reference (same bf16 operand precision, f32 accumulation)."""
    B = x_nchw.shape[0]
    x = x_nchw.reshape(B, -1).astype(jnp.bfloat16)
    feats = [
        jnp.dot(x, params["wf"][c].astype(jnp.bfloat16),
                preferred_element_type=jnp.float32) + params["bf"][c]
        for c in range(num_classes)
    ]
    V = jnp.concatenate(feats, axis=-1)
    h = jnp.maximum(
        jnp.dot(V.astype(jnp.bfloat16), params["w1"].astype(jnp.bfloat16),
                preferred_element_type=jnp.float32) + params["b1"], 0.0)
    return jnp.dot(h.astype(jnp.bfloat16), params["w2"].astype(jnp.bfloat16),
                   preferred_element_type=jnp.float32) + params["b2"]


if __name__ == "__main__":
    num_FIRs = 2
    num_classes = 3
    B, C, H, W = 2, 4, 16, 16          # small NCHW input
    d_in = C * H * W

    key = jax.random.PRNGKey(0)
    kx, kp = jax.random.split(key)
    x = jax.random.normal(kx, (B, C, H, W), jnp.float32)
    params = init_params(kp, d_in=d_in, num_classes=num_classes, num_FIRs=num_FIRs)

    out = fir_ccf_forward(x, params, num_classes=num_classes, num_FIRs=num_FIRs)
    out = jax.block_until_ready(out)

    ref = _reference_forward(x, params, num_classes=num_classes, num_FIRs=num_FIRs)
    assert out.shape == (B, num_classes), out.shape
    assert jnp.allclose(out, ref, atol=5e-3, rtol=5e-3), (out, ref)

    print("KERNEL_OK")
</pallas_src>

<mosaic_0001>
module attributes {stable_mosaic.version = 11 : i64} {
  func.func @_fir_ccf_kernel(%arg0: i32, %arg1: memref<8x1024xbf16, #tpu.memory_space<vmem>>, %arg2: memref<1024x128xbf16, #tpu.memory_space<vmem>>, %arg3: memref<1x128xf32, #tpu.memory_space<vmem>>, %arg4: memref<128x128xbf16, #tpu.memory_space<vmem>>, %arg5: memref<1x128xf32, #tpu.memory_space<vmem>>, %arg6: memref<128x128xbf16, #tpu.memory_space<vmem>>, %arg7: memref<1x128xf32, #tpu.memory_space<vmem>>, %arg8: memref<8x128xf32, #tpu.memory_space<vmem>>) attributes {dimension_semantics = [#tpu.dimension_semantics<parallel>], iteration_bounds = array<i64: 1>, scalar_prefetch = 0 : i64, scratch_operands = 0 : i64, tpu.core_type = #tpu.core_type<tc>, window_params = [{transform_indices = @transform_0, window_bounds = array<i64: 8, 1024>}, {pipeline_mode = #tpu.pipeline_mode<synchronous>, transform_indices = @transform_1, window_bounds = array<i64: 1024, 128>}, {pipeline_mode = #tpu.pipeline_mode<synchronous>, transform_indices = @transform_2, window_bounds = array<i64: 1, 128>}, {pipeline_mode = #tpu.pipeline_mode<synchronous>, transform_indices = @transform_3, window_bounds = array<i64: 128, 128>}, {pipeline_mode = #tpu.pipeline_mode<synchronous>, transform_indices = @transform_4, window_bounds = array<i64: 1, 128>}, {pipeline_mode = #tpu.pipeline_mode<synchronous>, transform_indices = @transform_5, window_bounds = array<i64: 128, 128>}, {pipeline_mode = #tpu.pipeline_mode<synchronous>, transform_indices = @transform_6, window_bounds = array<i64: 1, 128>}, {transform_indices = @transform_7, window_bounds = array<i64: 8, 128>}]} {
    %c0 = arith.constant 0 : index
    %c0_0 = arith.constant 0 : index
    %0 = vector.load %arg1[%c0, %c0_0] : memref<8x1024xbf16, #tpu.memory_space<vmem>>, vector<8x1024xbf16>
    %c0_1 = arith.constant 0 : index
    %c0_2 = arith.constant 0 : index
    %1 = vector.load %arg2[%c0_1, %c0_2] : memref<1024x128xbf16, #tpu.memory_space<vmem>>, vector<1024x128xbf16>
    %cst = arith.constant dense<0.000000e+00> : vector<8x128xf32>
    %2 = tpu.matmul %0, %1, %cst {dimension_numbers = #tpu.dot_dimension_numbers<[1], [0], [0], [1], [0, 0, 1, 1], [], []>} : vector<8x1024xbf16>, vector<1024x128xbf16>, vector<8x128xf32> -> vector<8x128xf32>
    %c0_3 = arith.constant 0 : index
    %c0_4 = arith.constant 0 : index
    %3 = vector.load %arg3[%c0_3, %c0_4] : memref<1x128xf32, #tpu.memory_space<vmem>>, vector<1x128xf32>
    %4 = vector.broadcast %3 : vector<1x128xf32> to vector<8x128xf32>
    %5 = arith.addf %2, %4 : vector<8x128xf32>
    %6 = arith.truncf %5 : vector<8x128xf32> to vector<8x128xbf16>
    %c0_5 = arith.constant 0 : index
    %c0_6 = arith.constant 0 : index
    %7 = vector.load %arg4[%c0_5, %c0_6] : memref<128x128xbf16, #tpu.memory_space<vmem>>, vector<128x128xbf16>
    %cst_7 = arith.constant dense<0.000000e+00> : vector<8x128xf32>
    %8 = tpu.matmul %6, %7, %cst_7 {dimension_numbers = #tpu.dot_dimension_numbers<[1], [0], [0], [1], [0, 0, 1, 1], [], []>} : vector<8x128xbf16>, vector<128x128xbf16>, vector<8x128xf32> -> vector<8x128xf32>
    %c0_8 = arith.constant 0 : index
    %c0_9 = arith.constant 0 : index
    %9 = vector.load %arg5[%c0_8, %c0_9] : memref<1x128xf32, #tpu.memory_space<vmem>>, vector<1x128xf32>
    %10 = vector.broadcast %9 : vector<1x128xf32> to vector<8x128xf32>
    %11 = arith.addf %8, %10 : vector<8x128xf32>
    %cst_10 = arith.constant 0.000000e+00 : f32
    %12 = vector.broadcast %cst_10 : f32 to vector<8x128xf32>
    %13 = arith.maximumf %11, %12 : vector<8x128xf32>
    %14 = arith.truncf %13 : vector<8x128xf32> to vector<8x128xbf16>
    %c0_11 = arith.constant 0 : index
    %c0_12 = arith.constant 0 : index
    %15 = vector.load %arg6[%c0_11, %c0_12] : memref<128x128xbf16, #tpu.memory_space<vmem>>, vector<128x128xbf16>
    %cst_13 = arith.constant dense<0.000000e+00> : vector<8x128xf32>
    %16 = tpu.matmul %14, %15, %cst_13 {dimension_numbers = #tpu.dot_dimension_numbers<[1], [0], [0], [1], [0, 0, 1, 1], [], []>} : vector<8x128xbf16>, vector<128x128xbf16>, vector<8x128xf32> -> vector<8x128xf32>
    %c0_14 = arith.constant 0 : index
    %c0_15 = arith.constant 0 : index
    %17 = vector.load %arg7[%c0_14, %c0_15] : memref<1x128xf32, #tpu.memory_space<vmem>>, vector<1x128xf32>
    %18 = vector.broadcast %17 : vector<1x128xf32> to vector<8x128xf32>
    %19 = arith.addf %16, %18 : vector<8x128xf32>
    %c0_16 = arith.constant 0 : index
    %c0_17 = arith.constant 0 : index
    %20 = vector.load %arg8[%c0_16, %c0_17] : memref<8x128xf32, #tpu.memory_space<vmem>>, vector<8x128xf32>
    tpu.vector_store %arg8[%c0_16, %c0_17], %19 {strides = array<i32>} : memref<8x128xf32, #tpu.memory_space<vmem>>, vector<8x128xf32>,
    return
  }
  func.func @transform_0(%arg0: i32) -> (i32, i32) {
    %c0_i32 = arith.constant 0 : i32
    %c0_i32_0 = arith.constant 0 : i32
    return %arg0, %c0_i32 : i32, i32
  }
  func.func @transform_1(%arg0: i32) -> (i32, i32) {
    %c0_i32 = arith.constant 0 : i32
    %c0_i32_0 = arith.constant 0 : i32
    %c0_i32_1 = arith.constant 0 : i32
    return %c0_i32, %c0_i32_0 : i32, i32
  }
  func.func @transform_2(%arg0: i32) -> (i32, i32) {
    %c0_i32 = arith.constant 0 : i32
    %c0_i32_0 = arith.constant 0 : i32
    %c0_i32_1 = arith.constant 0 : i32
    return %c0_i32, %c0_i32_0 : i32, i32
  }
  func.func @transform_3(%arg0: i32) -> (i32, i32) {
    %c0_i32 = arith.constant 0 : i32
    %c0_i32_0 = arith.constant 0 : i32
    %c0_i32_1 = arith.constant 0 : i32
    return %c0_i32, %c0_i32_0 : i32, i32
  }
  func.func @transform_4(%arg0: i32) -> (i32, i32) {
    %c0_i32 = arith.constant 0 : i32
    %c0_i32_0 = arith.constant 0 : i32
    %c0_i32_1 = arith.constant 0 : i32
    return %c0_i32, %c0_i32_0 : i32, i32
  }
  func.func @transform_5(%arg0: i32) -> (i32, i32) {
    %c0_i32 = arith.constant 0 : i32
    %c0_i32_0 = arith.constant 0 : i32
    %c0_i32_1 = arith.constant 0 : i32
    return %c0_i32, %c0_i32_0 : i32, i32
  }
  func.func @transform_6(%arg0: i32) -> (i32, i32) {
    %c0_i32 = arith.constant 0 : i32
    %c0_i32_0 = arith.constant 0 : i32
    %c0_i32_1 = arith.constant 0 : i32
    return %c0_i32, %c0_i32_0 : i32, i32
  }
  func.func @transform_7(%arg0: i32) -> (i32, i32) {
    %c0_i32 = arith.constant 0 : i32
    %c0_i32_0 = arith.constant 0 : i32
    return %arg0, %c0_i32 : i32, i32
  }
}

</mosaic_0001>

<llo_original>
// kernel: fir_ccf_forward.1
$region0: #{fir_ccf_forward.1}
  #allocation0 [shape = 'u32[]', space=smem, size = 0x4, offset = 0x4, fixed_abs, tag = 'smem constant byte address 0x4 - core index']
  #allocation1 [shape = 'u32[144,128]{1,0:T(1,128)}', space=vmem, size = 0x12000, scoped, tag = 'internal scratch']
  %s0 = inlined_call_operand.vmem [shape: bf16[8,1024], index: 0, kind: input, shape index: {}]
  %s1 = inlined_call_operand.vmem [shape: bf16[1024,128], index: 1, kind: input, shape index: {}]
  %s2 = inlined_call_operand.vmem [shape: f32[1,128], index: 2, kind: input, shape index: {}]
  %s3 = inlined_call_operand.vmem [shape: bf16[128,128], index: 3, kind: input, shape index: {}]
  %s4 = inlined_call_operand.vmem [shape: f32[1,128], index: 4, kind: input, shape index: {}]
  %s5 = inlined_call_operand.vmem [shape: bf16[128,128], index: 5, kind: input, shape index: {}]
  %s6 = inlined_call_operand.vmem [shape: f32[1,128], index: 6, kind: input, shape index: {}]
  %s7 = inlined_call_operand.vmem [shape: f32[8,128], index: 7, kind: output, shape index: {}]
  %s8 = sld [smem:[#allocation0]]
  $region38: #{fir_ccf_forward.1} parent=0
    _
  %s10 = ssub.s32 1, %s8
  %s11 = scalar_select 0, %s10, %s8
  // Predicated region
  $region2: #{fir_ccf_forward.1} parent=0 // pred_check
    _
  $region3: #{fir_ccf_forward.1} parent=0 // pred_check_branch
    %13 = sbr.rel (0) target = $region5
  $region4: #{fir_ccf_forward.1} parent=0 // pred_region
    _
  $region5: #{fir_ccf_forward.1} parent=0 // pred_fallthru
    _
  // Predicated region
  $region6: #{fir_ccf_forward.1} parent=0 // pred_check
    _
  $region7: #{fir_ccf_forward.1} parent=0 // pred_check_branch
    %15 = sbr.rel (0) target = $region9
  $region8: #{fir_ccf_forward.1} parent=0 // pred_region
    _
  $region9: #{fir_ccf_forward.1} parent=0 // pred_fallthru
    _
  // Predicated region
  $region10: #{fir_ccf_forward.1} parent=0 // pred_check
    _
  $region11: #{fir_ccf_forward.1} parent=0 // pred_check_branch
    %17 = sbr.rel (0) target = $region13
  $region12: #{fir_ccf_forward.1} parent=0 // pred_region
    _
  $region13: #{fir_ccf_forward.1} parent=0 // pred_fallthru
    _
  // Predicated region
  $region14: #{fir_ccf_forward.1} parent=0 // pred_check
    _
  $region15: #{fir_ccf_forward.1} parent=0 // pred_check_branch
    %19 = sbr.rel (0) target = $region17
  $region16: #{fir_ccf_forward.1} parent=0 // pred_region
    _
  $region17: #{fir_ccf_forward.1} parent=0 // pred_fallthru
    _
  // Predicated region
  $region18: #{fir_ccf_forward.1} parent=0 // pred_check
    _
  $region19: #{fir_ccf_forward.1} parent=0 // pred_check_branch
    %21 = sbr.rel (0) target = $region21
  $region20: #{fir_ccf_forward.1} parent=0 // pred_region
    _
  $region21: #{fir_ccf_forward.1} parent=0 // pred_fallthru
    _
  // Predicated region
  $region22: #{fir_ccf_forward.1} parent=0 // pred_check
    _
  $region23: #{fir_ccf_forward.1} parent=0 // pred_check_branch
    %23 = sbr.rel (0) target = $region25
  $region24: #{fir_ccf_forward.1} parent=0 // pred_region
    _
  $region25: #{fir_ccf_forward.1} parent=0 // pred_fallthru
    _
  // Predicated region
  $region26: #{fir_ccf_forward.1} parent=0 // pred_check
    _
  $region27: #{fir_ccf_forward.1} parent=0 // pred_check_branch
    %25 = sbr.rel (0) target = $region29
  $region28: #{fir_ccf_forward.1} parent=0 // pred_region
    _
  $region29: #{fir_ccf_forward.1} parent=0 // pred_fallthru
    _
  %v27 = vld [vmem:[%s0] sm:$0xff]
  %v28 = vld [vmem:[%s0 + $0x8] sm:$0xff]
  %v29 = vld [vmem:[%s0 + $0x10] sm:$0xff]
  %v30 = vld [vmem:[%s0 + $0x18] sm:$0xff]
  %v31 = vld [vmem:[%s1] sm:$0xf]
  %v32 = vld [vmem:[%s1 + $0x4] sm:$0xf]
  %v33 = vld [vmem:[%s1 + $0x8] sm:$0xf]
  %v34 = vld [vmem:[%s1 + $0xc] sm:$0xf]
  %v35 = vld [vmem:[%s1 + $0x10] sm:$0xf]
  %v36 = vld [vmem:[%s1 + $0x14] sm:$0xf]
  %v37 = vld [vmem:[%s1 + $0x18] sm:$0xf]
  %v38 = vld [vmem:[%s1 + $0x1c] sm:$0xf]
  %v39 = vld [vmem:[%s1 + $0x20] sm:$0xf]
  %v40 = vld [vmem:[%s1 + $0x24] sm:$0xf]
  %v41 = vld [vmem:[%s1 + $0x28] sm:$0xf]
  %v42 = vld [vmem:[%s1 + $0x2c] sm:$0xf]
  %v43 = vld [vmem:[%s1 + $0x30] sm:$0xf]
  %v44 = vld [vmem:[%s1 + $0x34] sm:$0xf]
  %v45 = vld [vmem:[%s1 + $0x38] sm:$0xf]
  %v46 = vld [vmem:[%s1 + $0x3c] sm:$0xf]
  %v47 = vld [vmem:[%s1 + $0x40] sm:$0xf]
  %v48 = vld [vmem:[%s1 + $0x44] sm:$0xf]
  %v49 = vld [vmem:[%s1 + $0x48] sm:$0xf]
  %v50 = vld [vmem:[%s1 + $0x4c] sm:$0xf]
  %v51 = vld [vmem:[%s1 + $0x50] sm:$0xf]
  %v52 = vld [vmem:[%s1 + $0x54] sm:$0xf]
  %v53 = vld [vmem:[%s1 + $0x58] sm:$0xf]
  %v54 = vld [vmem:[%s1 + $0x5c] sm:$0xf]
  %v55 = vld [vmem:[%s1 + $0x60] sm:$0xf]
  %v56 = vld [vmem:[%s1 + $0x64] sm:$0xf]
  %v57 = vld [vmem:[%s1 + $0x68] sm:$0xf]
  %v58 = vld [vmem:[%s1 + $0x6c] sm:$0xf]
  %v59 = vld [vmem:[%s1 + $0x70] sm:$0xf]
  %v60 = vld [vmem:[%s1 + $0x74] sm:$0xf]
  %v61 = vld [vmem:[%s1 + $0x78] sm:$0xf]
  %v62 = vld [vmem:[%s1 + $0x7c] sm:$0xf]
  %v63 = vld [vmem:[%s1 + $0x80] sm:$0xf]
  %v64 = vld [vmem:[%s1 + $0x84] sm:$0xf]
  %v65 = vld [vmem:[%s1 + $0x88] sm:$0xf]
  %v66 = vld [vmem:[%s1 + $0x8c] sm:$0xf]
  %v67 = vld [vmem:[%s1 + $0x90] sm:$0xf]
  %v68 = vld [vmem:[%s1 + $0x94] sm:$0xf]
  %v69 = vld [vmem:[%s1 + $0x98] sm:$0xf]
  %v70 = vld [vmem:[%s1 + $0x9c] sm:$0xf]
  %v71 = vld [vmem:[%s1 + $0xa0] sm:$0xf]
  %v72 = vld [vmem:[%s1 + $0xa4] sm:$0xf]
  %v73 = vld [vmem:[%s1 + $0xa8] sm:$0xf]
  %v74 = vld [vmem:[%s1 + $0xac] sm:$0xf]
  %v75 = vld [vmem:[%s1 + $0xb0] sm:$0xf]
  %v76 = vld [vmem:[%s1 + $0xb4] sm:$0xf]
  %v77 = vld [vmem:[%s1 + $0xb8] sm:$0xf]
  %v78 = vld [vmem:[%s1 + $0xbc] sm:$0xf]
  %v79 = vld [vmem:[%s1 + $0xc0] sm:$0xf]
  %v80 = vld [vmem:[%s1 + $0xc4] sm:$0xf]
  %v81 = vld [vmem:[%s1 + $0xc8] sm:$0xf]
  %v82 = vld [vmem:[%s1 + $0xcc] sm:$0xf]
  %v83 = vld [vmem:[%s1 + $0xd0] sm:$0xf]
  %v84 = vld [vmem:[%s1 + $0xd4] sm:$0xf]
  %v85 = vld [vmem:[%s1 + $0xd8] sm:$0xf]
  %v86 = vld [vmem:[%s1 + $0xdc] sm:$0xf]
  %v87 = vld [vmem:[%s1 + $0xe0] sm:$0xf]
  %v88 = vld [vmem:[%s1 + $0xe4] sm:$0xf]
  %v89 = vld [vmem:[%s1 + $0xe8] sm:$0xf]
  %v90 = vld [vmem:[%s1 + $0xec] sm:$0xf]
  %v91 = vld [vmem:[%s1 + $0xf0] sm:$0xf]
  %v92 = vld [vmem:[%s1 + $0xf4] sm:$0xf]
  %v93 = vld [vmem:[%s1 + $0xf8] sm:$0xf]
  %v94 = vld [vmem:[%s1 + $0xfc] sm:$0xf]
  %v95 = vld [vmem:[%s1 + $0x100] sm:$0xf]
  %v96 = vld [vmem:[%s1 + $0x104] sm:$0xf]
  %v97 = vld [vmem:[%s1 + $0x108] sm:$0xf]
  %v98 = vld [vmem:[%s1 + $0x10c] sm:$0xf]
  %v99 = vld [vmem:[%s1 + $0x110] sm:$0xf]
  %v100 = vld [vmem:[%s1 + $0x114] sm:$0xf]
  %v101 = vld [vmem:[%s1 + $0x118] sm:$0xf]
  %v102 = vld [vmem:[%s1 + $0x11c] sm:$0xf]
  %v103 = vld [vmem:[%s1 + $0x120] sm:$0xf]
  %v104 = vld [vmem:[%s1 + $0x124] sm:$0xf]
  %v105 = vld [vmem:[%s1 + $0x128] sm:$0xf]
  %v106 = vld [vmem:[%s1 + $0x12c] sm:$0xf]
  %v107 = vld [vmem:[%s1 + $0x130] sm:$0xf]
  %v108 = vld [vmem:[%s1 + $0x134] sm:$0xf]
  %v109 = vld [vmem:[%s1 + $0x138] sm:$0xf]
  %v110 = vld [vmem:[%s1 + $0x13c] sm:$0xf]
  %v111 = vld [vmem:[%s1 + $0x140] sm:$0xf]
  %v112 = vld [vmem:[%s1 + $0x144] sm:$0xf]
  %v113 = vld [vmem:[%s1 + $0x148] sm:$0xf]
  %v114 = vld [vmem:[%s1 + $0x14c] sm:$0xf]
  %v115 = vld [vmem:[%s1 + $0x150] sm:$0xf]
  %v116 = vld [vmem:[%s1 + $0x154] sm:$0xf]
  %v117 = vld [vmem:[%s1 + $0x158] sm:$0xf]
  %v118 = vld [vmem:[%s1 + $0x15c] sm:$0xf]
  %v119 = vld [vmem:[%s1 + $0x160] sm:$0xf]
  %v120 = vld [vmem:[%s1 + $0x164] sm:$0xf]
  %v121 = vld [vmem:[%s1 + $0x168] sm:$0xf]
  %v122 = vld [vmem:[%s1 + $0x16c] sm:$0xf]
  %v123 = vld [vmem:[%s1 + $0x170] sm:$0xf]
  %v124 = vld [vmem:[%s1 + $0x174] sm:$0xf]
  %v125 = vld [vmem:[%s1 + $0x178] sm:$0xf]
  %v126 = vld [vmem:[%s1 + $0x17c] sm:$0xf]
  %v127 = vld [vmem:[%s1 + $0x180] sm:$0xf]
  %v128 = vld [vmem:[%s1 + $0x184] sm:$0xf]
  %v129 = vld [vmem:[%s1 + $0x188] sm:$0xf]
  %v130 = vld [vmem:[%s1 + $0x18c] sm:$0xf]
  %v131 = vld [vmem:[%s1 + $0x190] sm:$0xf]
  %v132 = vld [vmem:[%s1 + $0x194] sm:$0xf]
  %v133 = vld [vmem:[%s1 + $0x198] sm:$0xf]
  %v134 = vld [vmem:[%s1 + $0x19c] sm:$0xf]
  %v135 = vld [vmem:[%s1 + $0x1a0] sm:$0xf]
  %v136 = vld [vmem:[%s1 + $0x1a4] sm:$0xf]
  %v137 = vld [vmem:[%s1 + $0x1a8] sm:$0xf]
  %v138 = vld [vmem:[%s1 + $0x1ac] sm:$0xf]
  %v139 = vld [vmem:[%s1 + $0x1b0] sm:$0xf]
  %v140 = vld [vmem:[%s1 + $0x1b4] sm:$0xf]
  %v141 = vld [vmem:[%s1 + $0x1b8] sm:$0xf]
  %v142 = vld [vmem:[%s1 + $0x1bc] sm:$0xf]
  %v143 = vld [vmem:[%s1 + $0x1c0] sm:$0xf]
  %v144 = vld [vmem:[%s1 + $0x1c4] sm:$0xf]
  %v145 = vld [vmem:[%s1 + $0x1c8] sm:$0xf]
  %v146 = vld [vmem:[%s1 + $0x1cc] sm:$0xf]
  %v147 = vld [vmem:[%s1 + $0x1d0] sm:$0xf]
  %v148 = vld [vmem:[%s1 + $0x1d4] sm:$0xf]
  %v149 = vld [vmem:[%s1 + $0x1d8] sm:$0xf]
  %v150 = vld [vmem:[%s1 + $0x1dc] sm:$0xf]
  %v151 = vld [vmem:[%s1 + $0x1e0] sm:$0xf]
  %v152 = vld [vmem:[%s1 + $0x1e4] sm:$0xf]
  %v153 = vld [vmem:[%s1 + $0x1e8] sm:$0xf]
  %v154 = vld [vmem:[%s1 + $0x1ec] sm:$0xf]
  %v155 = vld [vmem:[%s1 + $0x1f0] sm:$0xf]
  %v156 = vld [vmem:[%s1 + $0x1f4] sm:$0xf]
  %v157 = vld [vmem:[%s1 + $0x1f8] sm:$0xf]
  %v158 = vld [vmem:[%s1 + $0x1fc] sm:$0xf]
  %v159 = vld [vmem:[%s2] sm:$0x1]
  %v161 = vlaneseq
  %v162 = vshrl.u32 %v161, 7
  %v163 = vsub.s32 0, %v162
  %v164 = vrot.slane %v159, %v163
  %v170 = vunpack.c.l.b16 %v27
  %v171 = vunpack.c.h.b16 %v27
  %v172 = vunpack.c.l.b16 %v28
  %v173 = vunpack.c.h.b16 %v28
  %v174 = vunpack.c.l.b16 %v29
  %v175 = vunpack.c.h.b16 %v29
  %v176 = vunpack.c.l.b16 %v30
  %v177 = vunpack.c.h.b16 %v30
  %v178 = vpack.c.b16 %v170, %v170
  %v179 = vpack.c.b16 %v171, %v171
  %v180 = vpack.c.b16 %v172, %v172
  %v181 = vpack.c.b16 %v173, %v173
  %v182 = vpack.c.b16 %v174, %v174
  %v183 = vpack.c.b16 %v175, %v175
  %v184 = vpack.c.b16 %v176, %v176
  %v185 = vpack.c.b16 %v177, %v177
  %v322 = vunpack.c.l.b16 %v31
  %v323 = vunpack.c.l.b16 %v32
  %v324 = vunpack.c.l.b16 %v33
  %v325 = vunpack.c.l.b16 %v34
  %v326 = vunpack.c.l.b16 %v35
  %v327 = vunpack.c.l.b16 %v36
  %v328 = vunpack.c.l.b16 %v37
  %v329 = vunpack.c.l.b16 %v38
  %v330 = vunpack.c.l.b16 %v39
  %v331 = vunpack.c.l.b16 %v40
  %v332 = vunpack.c.l.b16 %v41
  %v333 = vunpack.c.l.b16 %v42
  %v334 = vunpack.c.l.b16 %v43
  %v335 = vunpack.c.l.b16 %v44
  %v336 = vunpack.c.l.b16 %v45
  %v337 = vunpack.c.l.b16 %v46
  %v338 = vunpack.c.l.b16 %v47
  %v339 = vunpack.c.l.b16 %v48
  %v340 = vunpack.c.l.b16 %v49
  %v341 = vunpack.c.l.b16 %v50
  %v342 = vunpack.c.l.b16 %v51
  %v343 = vunpack.c.l.b16 %v52
  %v344 = vunpack.c.l.b16 %v53
  %v345 = vunpack.c.l.b16 %v54
  %v346 = vunpack.c.l.b16 %v55
  %v347 = vunpack.c.l.b16 %v56
  %v348 = vunpack.c.l.b16 %v57
  %v349 = vunpack.c.l.b16 %v58
  %v350 = vunpack.c.l.b16 %v59
  %v351 = vunpack.c.l.b16 %v60
  %v352 = vunpack.c.l.b16 %v61
  %v353 = vunpack.c.l.b16 %v62
  %v354 = vunpack.c.l.b16 %v63
  %v355 = vunpack.c.l.b16 %v64
  %v356 = vunpack.c.l.b16 %v65
  %v357 = vunpack.c.l.b16 %v66
  %v358 = vunpack.c.l.b16 %v67
  %v359 = vunpack.c.l.b16 %v68
  %v360 = vunpack.c.l.b16 %v69
  %v361 = vunpack.c.l.b16 %v70
  %v362 = vunpack.c.l.b16 %v71
  %v363 = vunpack.c.l.b16 %v72
  %v364 = vunpack.c.l.b16 %v73
  %v365 = vunpack.c.l.b16 %v74
  %v366 = vunpack.c.l.b16 %v75
  %v367 = vunpack.c.l.b16 %v76
  %v368 = vunpack.c.l.b16 %v77
  %v369 = vunpack.c.l.b16 %v78
  %v370 = vunpack.c.l.b16 %v79
  %v371 = vunpack.c.l.b16 %v80
  %v372 = vunpack.c.l.b16 %v81
  %v373 = vunpack.c.l.b16 %v82
  %v374 = vunpack.c.l.b16 %v83
  %v375 = vunpack.c.l.b16 %v84
  %v376 = vunpack.c.l.b16 %v85
  %v377 = vunpack.c.l.b16 %v86
  %v378 = vunpack.c.l.b16 %v87
  %v379 = vunpack.c.l.b16 %v88
  %v380 = vunpack.c.l.b16 %v89
  %v381 = vunpack.c.l.b16 %v90
  %v382 = vunpack.c.l.b16 %v91
  %v383 = vunpack.c.l.b16 %v92
  %v384 = vunpack.c.l.b16 %v93
  %v385 = vunpack.c.l.b16 %v94
  %v386 = vunpack.c.l.b16 %v95
  %v387 = vunpack.c.l.b16 %v96
  %v388 = vunpack.c.l.b16 %v97
  %v389 = vunpack.c.l.b16 %v98
  %v390 = vunpack.c.l.b16 %v99
  %v391 = vunpack.c.l.b16 %v100
  %v392 = vunpack.c.l.b16 %v101
  %v393 = vunpack.c.l.b16 %v102
  %v394 = vunpack.c.l.b16 %v103
  %v395 = vunpack.c.l.b16 %v104
  %v396 = vunpack.c.l.b16 %v105
  %v397 = vunpack.c.l.b16 %v106
  %v398 = vunpack.c.l.b16 %v107
  %v399 = vunpack.c.l.b16 %v108
  %v400 = vunpack.c.l.b16 %v109
  %v401 = vunpack.c.l.b16 %v110
  %v402 = vunpack.c.l.b16 %v111
  %v403 = vunpack.c.l.b16 %v112
  %v404 = vunpack.c.l.b16 %v113
  %v405 = vunpack.c.l.b16 %v114
  %v406 = vunpack.c.l.b16 %v115
  %v407 = vunpack.c.l.b16 %v116
  %v408 = vunpack.c.l.b16 %v117
  %v409 = vunpack.c.l.b16 %v118
  %v410 = vunpack.c.l.b16 %v119
  %v411 = vunpack.c.l.b16 %v120
  %v412 = vunpack.c.l.b16 %v121
  %v413 = vunpack.c.l.b16 %v122
  %v414 = vunpack.c.l.b16 %v123
  %v415 = vunpack.c.l.b16 %v124
  %v416 = vunpack.c.l.b16 %v125
  %v417 = vunpack.c.l.b16 %v126
  %v418 = vunpack.c.l.b16 %v127
  %v419 = vunpack.c.l.b16 %v128
  %v420 = vunpack.c.l.b16 %v129
  %v421 = vunpack.c.l.b16 %v130
  %v422 = vunpack.c.l.b16 %v131
  %v423 = vunpack.c.l.b16 %v132
  %v424 = vunpack.c.l.b16 %v133
  %v425 = vunpack.c.l.b16 %v134
  %v426 = vunpack.c.l.b16 %v135
  %v427 = vunpack.c.l.b16 %v136
  %v428 = vunpack.c.l.b16 %v137
  %v429 = vunpack.c.l.b16 %v138
  %v430 = vunpack.c.l.b16 %v139
  %v431 = vunpack.c.l.b16 %v140
  %v432 = vunpack.c.l.b16 %v141
  %v433 = vunpack.c.l.b16 %v142
  %v434 = vunpack.c.l.b16 %v143
  %v435 = vunpack.c.l.b16 %v144
  %v436 = vunpack.c.l.b16 %v145
  %v437 = vunpack.c.l.b16 %v146
  %v438 = vunpack.c.l.b16 %v147
  %v439 = vunpack.c.l.b16 %v148
  %v440 = vunpack.c.l.b16 %v149
  %v441 = vunpack.c.l.b16 %v150
  %v442 = vunpack.c.l.b16 %v151
  %v443 = vunpack.c.l.b16 %v152
  %v444 = vunpack.c.l.b16 %v153
  %v445 = vunpack.c.l.b16 %v154
  %v446 = vunpack.c.l.b16 %v155
  %v447 = vunpack.c.l.b16 %v156
  %v448 = vunpack.c.l.b16 %v157
  %v449 = vunpack.c.l.b16 %v158
  %v450 = vpack.c.b16 %v323, %v322
  %v451 = vpack.c.b16 %v325, %v324
  %v452 = vpack.c.b16 %v327, %v326
  %v453 = vpack.c.b16 %v329, %v328
  %v454 = vpack.c.b16 %v331, %v330
  %v455 = vpack.c.b16 %v333, %v332
  %v456 = vpack.c.b16 %v335, %v334
  %v457 = vpack.c.b16 %v337, %v336
  %v458 = vpack.c.b16 %v339, %v338
  %v459 = vpack.c.b16 %v341, %v340
  %v460 = vpack.c.b16 %v343, %v342
  %v461 = vpack.c.b16 %v345, %v344
  %v462 = vpack.c.b16 %v347, %v346
  %v463 = vpack.c.b16 %v349, %v348
  %v464 = vpack.c.b16 %v351, %v350
  %v465 = vpack.c.b16 %v353, %v352
  %v466 = vpack.c.b16 %v355, %v354
  %v467 = vpack.c.b16 %v357, %v356
  %v468 = vpack.c.b16 %v359, %v358
  %v469 = vpack.c.b16 %v361, %v360
  %v470 = vpack.c.b16 %v363, %v362
  %v471 = vpack.c.b16 %v365, %v364
  %v472 = vpack.c.b16 %v367, %v366
  %v473 = vpack.c.b16 %v369, %v368
  %v474 = vpack.c.b16 %v371, %v370
  %v475 = vpack.c.b16 %v373, %v372
  %v476 = vpack.c.b16 %v375, %v374
  %v477 = vpack.c.b16 %v377, %v376
  %v478 = vpack.c.b16 %v379, %v378
  %v479 = vpack.c.b16 %v381, %v380
  %v480 = vpack.c.b16 %v383, %v382
  %v481 = vpack.c.b16 %v385, %v384
  %v482 = vpack.c.b16 %v387, %v386
  %v483 = vpack.c.b16 %v389, %v388
  %v484 = vpack.c.b16 %v391, %v390
  %v485 = vpack.c.b16 %v393, %v392
  %v486 = vpack.c.b16 %v395, %v394
  %v487 = vpack.c.b16 %v397, %v396
  %v488 = vpack.c.b16 %v399, %v398
  %v489 = vpack.c.b16 %v401, %v400
  %v490 = vpack.c.b16 %v403, %v402
  %v491 = vpack.c.b16 %v405, %v404
  %v492 = vpack.c.b16 %v407, %v406
  %v493 = vpack.c.b16 %v409, %v408
  %v494 = vpack.c.b16 %v411, %v410
  %v495 = vpack.c.b16 %v413, %v412
  %v496 = vpack.c.b16 %v415, %v414
  %v497 = vpack.c.b16 %v417, %v416
  %v498 = vpack.c.b16 %v419, %v418
  %v499 = vpack.c.b16 %v421, %v420
  %v500 = vpack.c.b16 %v423, %v422
  %v501 = vpack.c.b16 %v425, %v424
  %v502 = vpack.c.b16 %v427, %v426
  %v503 = vpack.c.b16 %v429, %v428
  %v504 = vpack.c.b16 %v431, %v430
  %v505 = vpack.c.b16 %v433, %v432
  %v506 = vpack.c.b16 %v435, %v434
  %v507 = vpack.c.b16 %v437, %v436
  %v508 = vpack.c.b16 %v439, %v438
  %v509 = vpack.c.b16 %v441, %v440
  %v510 = vpack.c.b16 %v443, %v442
  %v511 = vpack.c.b16 %v445, %v444
  %v512 = vpack.c.b16 %v447, %v446
  %v513 = vpack.c.b16 %v449, %v448
  %578 = vmatprep.subr.bf16.mxu0 0
  %579 = vmatpush1.bf16.msra.mxu0 %v457
  %580 = vmatprep.subr.bf16.mxu0 0
  %581 = vmatpush1.bf16.msra.mxu0 %v456
  %582 = vmatprep.subr.bf16.mxu0 0
  %583 = vmatpush1.bf16.msra.mxu0 %v455
  %584 = vmatprep.subr.bf16.mxu0 0
  %585 = vmatpush1.bf16.msra.mxu0 %v454
  %586 = vmatprep.subr.bf16.mxu0 0
  %587 = vmatpush1.bf16.msra.mxu0 %v453
  %588 = vmatprep.subr.bf16.mxu0 0
  %589 = vmatpush1.bf16.msra.mxu0 %v452
  %590 = vmatprep.subr.bf16.mxu0 0
  %591 = vmatpush1.bf16.msra.mxu0 %v451
  %592 = vmatprep.subr.bf16.mxu0 0
  %593 = vmatpush1.bf16.msra.mxu0 %v450
  %594 = vmatprep.subr.bf16.mxu0 0
  %595 = vmatpush2.bf16.msra.mxu0 %v465
  %596 = vmatprep.subr.bf16.mxu0 0
  %597 = vmatpush2.bf16.msra.mxu0 %v464
  %598 = vmatprep.subr.bf16.mxu0 0
  %599 = vmatpush2.bf16.msra.mxu0 %v463
  %600 = vmatprep.subr.bf16.mxu0 0
  %601 = vmatpush2.bf16.msra.mxu0 %v462
  %602 = vmatprep.subr.bf16.mxu0 0
  %603 = vmatpush2.bf16.msra.mxu0 %v461
  %604 = vmatprep.subr.bf16.mxu0 0
  %605 = vmatpush2.bf16.msra.mxu0 %v460
  %606 = vmatprep.subr.bf16.mxu0 0
  %607 = vmatpush2.bf16.msra.mxu0 %v459
  %608 = vmatprep.subr.bf16.mxu0 0
  %609 = vmatpush2.bf16.msra.mxu0 %v458
  %610 = vmatprep.mubr.bf16.mxu0 %v179
  %611 = vmatmul.mubr.bf16.gmra.mxu0 %v178
  %v612 = vpop.f32.mrf.mxu0
  %v613 = vadd.f32 %v164, %v612
  %v614 = vpop.f32.mrf.mxu0
  %v615 = vpop.f32.mrf.mxu0
  %v616 = vpop.f32.mrf.mxu0
  %617 = vdwg.mxu0
  %618 = vmatprep.subr.bf16.mxu0 0
  %619 = vmatpush1.bf16.msra.mxu0 %v473
  %620 = vmatprep.subr.bf16.mxu0 0
  %621 = vmatpush1.bf16.msra.mxu0 %v472
  %622 = vmatprep.subr.bf16.mxu0 0
  %623 = vmatpush1.bf16.msra.mxu0 %v471
  %624 = vmatprep.subr.bf16.mxu0 0
  %625 = vmatpush1.bf16.msra.mxu0 %v470
  %626 = vmatprep.subr.bf16.mxu0 0
  %627 = vmatpush1.bf16.msra.mxu0 %v469
  %628 = vmatprep.subr.bf16.mxu0 0
  %629 = vmatpush1.bf16.msra.mxu0 %v468
  %630 = vmatprep.subr.bf16.mxu0 0
  %631 = vmatpush1.bf16.msra.mxu0 %v467
  %632 = vmatprep.subr.bf16.mxu0 0
  %633 = vmatpush1.bf16.msra.mxu0 %v466
  %634 = vmatprep.subr.bf16.mxu0 0
  %635 = vmatpush2.bf16.msra.mxu0 %v481
  %636 = vmatprep.subr.bf16.mxu0 0
  %637 = vmatpush2.bf16.msra.mxu0 %v480
  %638 = vmatprep.subr.bf16.mxu0 0
  %639 = vmatpush2.bf16.msra.mxu0 %v479
  %640 = vmatprep.subr.bf16.mxu0 0
  %641 = vmatpush2.bf16.msra.mxu0 %v478
  %642 = vmatprep.subr.bf16.mxu0 0
  %643 = vmatpush2.bf16.msra.mxu0 %v477
  %644 = vmatprep.subr.bf16.mxu0 0
  %645 = vmatpush2.bf16.msra.mxu0 %v476
  %646 = vmatprep.subr.bf16.mxu0 0
  %647 = vmatpush2.bf16.msra.mxu0 %v475
  %648 = vmatprep.subr.bf16.mxu0 0
  %649 = vmatpush2.bf16.msra.mxu0 %v474
  %650 = vmatprep.mubr.bf16.mxu0 %v181
  %651 = vmatmul.mubr.bf16.gmra.mxu0 %v180
  %v652 = vpop.f32.mrf.mxu0
  %v653 = vadd.f32 %v613, %v652
  %v654 = vpop.f32.mrf.mxu0
  %v655 = vpop.f32.mrf.mxu0
  %v656 = vpop.f32.mrf.mxu0
  %657 = vdwg.mxu0
  %658 = vmatprep.subr.bf16.mxu0 0
  %659 = vmatpush1.bf16.msra.mxu0 %v489
  %660 = vmatprep.subr.bf16.mxu0 0
  %661 = vmatpush1.bf16.msra.mxu0 %v488
  %662 = vmatprep.subr.bf16.mxu0 0
  %663 = vmatpush1.bf16.msra.mxu0 %v487
  %664 = vmatprep.subr.bf16.mxu0 0
  %665 = vmatpush1.bf16.msra.mxu0 %v486
  %666 = vmatprep.subr.bf16.mxu0 0
  %667 = vmatpush1.bf16.msra.mxu0 %v485
  %668 = vmatprep.subr.bf16.mxu0 0
  %669 = vmatpush1.bf16.msra.mxu0 %v484
  %670 = vmatprep.subr.bf16.mxu0 0
  %671 = vmatpush1.bf16.msra.mxu0 %v483
  %672 = vmatprep.subr.bf16.mxu0 0
  %673 = vmatpush1.bf16.msra.mxu0 %v482
  %674 = vmatprep.subr.bf16.mxu0 0
  %675 = vmatpush2.bf16.msra.mxu0 %v497
  %676 = vmatprep.subr.bf16.mxu0 0
  %677 = vmatpush2.bf16.msra.mxu0 %v496
  %678 = vmatprep.subr.bf16.mxu0 0
  %679 = vmatpush2.bf16.msra.mxu0 %v495
  %680 = vmatprep.subr.bf16.mxu0 0
  %681 = vmatpush2.bf16.msra.mxu0 %v494
  %682 = vmatprep.subr.bf16.mxu0 0
  %683 = vmatpush2.bf16.msra.mxu0 %v493
  %684 = vmatprep.subr.bf16.mxu0 0
  %685 = vmatpush2.bf16.msra.mxu0 %v492
  %686 = vmatprep.subr.bf16.mxu0 0
  %687 = vmatpush2.bf16.msra.mxu0 %v491
  %688 = vmatprep.subr.bf16.mxu0 0
  %689 = vmatpush2.bf16.msra.mxu0 %v490
  %690 = vmatprep.mubr.bf16.mxu0 %v183
  %691 = vmatmul.mubr.bf16.gmra.mxu0 %v182
  %v692 = vpop.f32.mrf.mxu0
  %v693 = vadd.f32 %v653, %v692
  %v694 = vpop.f32.mrf.mxu0
  %v695 = vpop.f32.mrf.mxu0
  %v696 = vpop.f32.mrf.mxu0
  %697 = vdwg.mxu0
  %698 = vmatprep.subr.bf16.mxu0 0
  %699 = vmatpush1.bf16.msra.mxu0 %v505
  %700 = vmatprep.subr.bf16.mxu0 0
  %701 = vmatpush1.bf16.msra.mxu0 %v504
  %702 = vmatprep.subr.bf16.mxu0 0
  %703 = vmatpush1.bf16.msra.mxu0 %v503
  %704 = vmatprep.subr.bf16.mxu0 0
  %705 = vmatpush1.bf16.msra.mxu0 %v502
  %706 = vmatprep.subr.bf16.mxu0 0
  %707 = vmatpush1.bf16.msra.mxu0 %v501
  %708 = vmatprep.subr.bf16.mxu0 0
  %709 = vmatpush1.bf16.msra.mxu0 %v500
  %710 = vmatprep.subr.bf16.mxu0 0
  %711 = vmatpush1.bf16.msra.mxu0 %v499
  %712 = vmatprep.subr.bf16.mxu0 0
  %713 = vmatpush1.bf16.msra.mxu0 %v498
  %714 = vmatprep.subr.bf16.mxu0 0
  %715 = vmatpush2.bf16.msra.mxu0 %v513
  %716 = vmatprep.subr.bf16.mxu0 0
  %717 = vmatpush2.bf16.msra.mxu0 %v512
  %718 = vmatprep.subr.bf16.mxu0 0
  %719 = vmatpush2.bf16.msra.mxu0 %v511
  %720 = vmatprep.subr.bf16.mxu0 0
  %721 = vmatpush2.bf16.msra.mxu0 %v510
  %722 = vmatprep.subr.bf16.mxu0 0
  %723 = vmatpush2.bf16.msra.mxu0 %v509
  %724 = vmatprep.subr.bf16.mxu0 0
  %725 = vmatpush2.bf16.msra.mxu0 %v508
  %726 = vmatprep.subr.bf16.mxu0 0
  %727 = vmatpush2.bf16.msra.mxu0 %v507
  %728 = vmatprep.subr.bf16.mxu0 0
  %729 = vmatpush2.bf16.msra.mxu0 %v506
  %730 = vmatprep.mubr.bf16.mxu0 %v185
  %731 = vmatmul.mubr.bf16.gmra.mxu0 %v184
  %v732 = vpop.f32.mrf.mxu0
  %v733 = vadd.f32 %v693, %v732
  %v734 = vpop.f32.mrf.mxu0
  %v735 = vpop.f32.mrf.mxu0
  %v736 = vpop.f32.mrf.mxu0
  %737 = vdwg.mxu0
  %v738 = vpack.c.bf16 %v733, %v733
  %v739 = vld [vmem:[%s3] sm:$0xf]
  %v740 = vld [vmem:[%s3 + $0x4] sm:$0xf]
  %v741 = vld [vmem:[%s3 + $0x8] sm:$0xf]
  %v742 = vld [vmem:[%s3 + $0xc] sm:$0xf]
  %v743 = vld [vmem:[%s3 + $0x10] sm:$0xf]
  %v744 = vld [vmem:[%s3 + $0x14] sm:$0xf]
  %v745 = vld [vmem:[%s3 + $0x18] sm:$0xf]
  %v746 = vld [vmem:[%s3 + $0x1c] sm:$0xf]
  %v747 = vld [vmem:[%s3 + $0x20] sm:$0xf]
  %v748 = vld [vmem:[%s3 + $0x24] sm:$0xf]
  %v749 = vld [vmem:[%s3 + $0x28] sm:$0xf]
  %v750 = vld [vmem:[%s3 + $0x2c] sm:$0xf]
  %v751 = vld [vmem:[%s3 + $0x30] sm:$0xf]
  %v752 = vld [vmem:[%s3 + $0x34] sm:$0xf]
  %v753 = vld [vmem:[%s3 + $0x38] sm:$0xf]
  %v754 = vld [vmem:[%s3 + $0x3c] sm:$0xf]
  %v755 = vld [vmem:[%s4] sm:$0x1]
  %v757 = vlaneseq
  %v758 = vshrl.u32 %v757, 7
  %v759 = vsub.s32 0, %v758
  %v760 = vrot.slane %v755, %v759
  %v778 = vunpack.c.l.b16 %v739
  %v779 = vunpack.c.l.b16 %v740
  %v780 = vunpack.c.l.b16 %v741
  %v781 = vunpack.c.l.b16 %v742
  %v782 = vunpack.c.l.b16 %v743
  %v783 = vunpack.c.l.b16 %v744
  %v784 = vunpack.c.l.b16 %v745
  %v785 = vunpack.c.l.b16 %v746
  %v786 = vunpack.c.l.b16 %v747
  %v787 = vunpack.c.l.b16 %v748
  %v788 = vunpack.c.l.b16 %v749
  %v789 = vunpack.c.l.b16 %v750
  %v790 = vunpack.c.l.b16 %v751
  %v791 = vunpack.c.l.b16 %v752
  %v792 = vunpack.c.l.b16 %v753
  %v793 = vunpack.c.l.b16 %v754
  %v794 = vpack.c.b16 %v779, %v778
  %v795 = vpack.c.b16 %v781, %v780
  %v796 = vpack.c.b16 %v783, %v782
  %v797 = vpack.c.b16 %v785, %v784
  %v798 = vpack.c.b16 %v787, %v786
  %v799 = vpack.c.b16 %v789, %v788
  %v800 = vpack.c.b16 %v791, %v790
  %v801 = vpack.c.b16 %v793, %v792
  %810 = vmatprep.subr.bf16.mxu0 0
  %811 = vmatpush1.bf16.msra.mxu0 %v801
  %812 = vmatprep.subr.bf16.mxu0 0
  %813 = vmatpush1.bf16.msra.mxu0 %v800
  %814 = vmatprep.subr.bf16.mxu0 0
  %815 = vmatpush1.bf16.msra.mxu0 %v799
  %816 = vmatprep.subr.bf16.mxu0 0
  %817 = vmatpush1.bf16.msra.mxu0 %v798
  %818 = vmatprep.subr.bf16.mxu0 0
  %819 = vmatpush1.bf16.msra.mxu0 %v797
  %820 = vmatprep.subr.bf16.mxu0 0
  %821 = vmatpush1.bf16.msra.mxu0 %v796
  %822 = vmatprep.subr.bf16.mxu0 0
  %823 = vmatpush1.bf16.msra.mxu0 %v795
  %824 = vmatprep.subr.bf16.mxu0 0
  %825 = vmatpush1.bf16.msra.mxu0 %v794
  %826 = vmatprep.subr.bf16.mxu0 0
  %827 = vmatpush2.bf16.msra.mxu0 0
  %828 = vmatprep.subr.bf16.mxu0 0
  %829 = vmatpush2.bf16.msra.mxu0 0
  %830 = vmatprep.subr.bf16.mxu0 0
  %831 = vmatpush2.bf16.msra.mxu0 0
  %832 = vmatprep.subr.bf16.mxu0 0
  %833 = vmatpush2.bf16.msra.mxu0 0
  %834 = vmatprep.subr.bf16.mxu0 0
  %835 = vmatpush2.bf16.msra.mxu0 0
  %836 = vmatprep.subr.bf16.mxu0 0
  %837 = vmatpush2.bf16.msra.mxu0 0
  %838 = vmatprep.subr.bf16.mxu0 0
  %839 = vmatpush2.bf16.msra.mxu0 0
  %840 = vmatprep.subr.bf16.mxu0 0
  %841 = vmatpush2.bf16.msra.mxu0 0
  %842 = vmatprep.mubr.bf16.mxu0 0
  %843 = vmatmul.mubr.bf16.gmra.mxu0 %v738
  %v844 = vpop.f32.mrf.mxu0
  %v845 = vadd.f32 %v760, %v844
  %v846 = vpop.f32.mrf.mxu0
  %v847 = vpop.f32.mrf.mxu0
  %v848 = vpop.f32.mrf.mxu0
  %849 = vdwg.mxu0
  %v850 = vmax.f32 %v845, 0.0
  %v851 = vpack.c.bf16 %v850, %v850
  %v852 = vld [vmem:[%s5] sm:$0xf]
  %v853 = vld [vmem:[%s5 + $0x4] sm:$0xf]
  %v854 = vld [vmem:[%s5 + $0x8] sm:$0xf]
  %v855 = vld [vmem:[%s5 + $0xc] sm:$0xf]
  %v856 = vld [vmem:[%s5 + $0x10] sm:$0xf]
  %v857 = vld [vmem:[%s5 + $0x14] sm:$0xf]
  %v858 = vld [vmem:[%s5 + $0x18] sm:$0xf]
  %v859 = vld [vmem:[%s5 + $0x1c] sm:$0xf]
  %v860 = vld [vmem:[%s5 + $0x20] sm:$0xf]
  %v861 = vld [vmem:[%s5 + $0x24] sm:$0xf]
  %v862 = vld [vmem:[%s5 + $0x28] sm:$0xf]
  %v863 = vld [vmem:[%s5 + $0x2c] sm:$0xf]
  %v864 = vld [vmem:[%s5 + $0x30] sm:$0xf]
  %v865 = vld [vmem:[%s5 + $0x34] sm:$0xf]
  %v866 = vld [vmem:[%s5 + $0x38] sm:$0xf]
  %v867 = vld [vmem:[%s5 + $0x3c] sm:$0xf]
  %v868 = vld [vmem:[%s6] sm:$0x1]
  %v870 = vlaneseq
  %v871 = vshrl.u32 %v870, 7
  %v872 = vsub.s32 0, %v871
  %v873 = vrot.slane %v868, %v872
  %v891 = vunpack.c.l.b16 %v852
  %v892 = vunpack.c.l.b16 %v853
  %v893 = vunpack.c.l.b16 %v854
  %v894 = vunpack.c.l.b16 %v855
  %v895 = vunpack.c.l.b16 %v856
  %v896 = vunpack.c.l.b16 %v857
  %v897 = vunpack.c.l.b16 %v858
  %v898 = vunpack.c.l.b16 %v859
  %v899 = vunpack.c.l.b16 %v860
  %v900 = vunpack.c.l.b16 %v861
  %v901 = vunpack.c.l.b16 %v862
  %v902 = vunpack.c.l.b16 %v863
  %v903 = vunpack.c.l.b16 %v864
  %v904 = vunpack.c.l.b16 %v865
  %v905 = vunpack.c.l.b16 %v866
  %v906 = vunpack.c.l.b16 %v867
  %v907 = vpack.c.b16 %v892, %v891
  %v908 = vpack.c.b16 %v894, %v893
  %v909 = vpack.c.b16 %v896, %v895
  %v910 = vpack.c.b16 %v898, %v897
  %v911 = vpack.c.b16 %v900, %v899
  %v912 = vpack.c.b16 %v902, %v901
  %v913 = vpack.c.b16 %v904, %v903
  %v914 = vpack.c.b16 %v906, %v905
  %923 = vmatprep.subr.bf16.mxu0 0
  %924 = vmatpush1.bf16.msra.mxu0 %v914
  %925 = vmatprep.subr.bf16.mxu0 0
  %926 = vmatpush1.bf16.msra.mxu0 %v913
  %927 = vmatprep.subr.bf16.mxu0 0
  %928 = vmatpush1.bf16.msra.mxu0 %v912
  %929 = vmatprep.subr.bf16.mxu0 0
  %930 = vmatpush1.bf16.msra.mxu0 %v911
  %931 = vmatprep.subr.bf16.mxu0 0
  %932 = vmatpush1.bf16.msra.mxu0 %v910
  %933 = vmatprep.subr.bf16.mxu0 0
  %934 = vmatpush1.bf16.msra.mxu0 %v909
  %935 = vmatprep.subr.bf16.mxu0 0
  %936 = vmatpush1.bf16.msra.mxu0 %v908
  %937 = vmatprep.subr.bf16.mxu0 0
  %938 = vmatpush1.bf16.msra.mxu0 %v907
  %939 = vmatprep.subr.bf16.mxu0 0
  %940 = vmatpush2.bf16.msra.mxu0 0
  %941 = vmatprep.subr.bf16.mxu0 0
  %942 = vmatpush2.bf16.msra.mxu0 0
  %943 = vmatprep.subr.bf16.mxu0 0
  %944 = vmatpush2.bf16.msra.mxu0 0
  %945 = vmatprep.subr.bf16.mxu0 0
  %946 = vmatpush2.bf16.msra.mxu0 0
  %947 = vmatprep.subr.bf16.mxu0 0
  %948 = vmatpush2.bf16.msra.mxu0 0
  %949 = vmatprep.subr.bf16.mxu0 0
  %950 = vmatpush2.bf16.msra.mxu0 0
  %951 = vmatprep.subr.bf16.mxu0 0
  %952 = vmatpush2.bf16.msra.mxu0 0
  %953 = vmatprep.subr.bf16.mxu0 0
  %954 = vmatpush2.bf16.msra.mxu0 0
  %955 = vmatprep.mubr.bf16.mxu0 0
  %956 = vmatmul.mubr.bf16.gmra.mxu0 %v851
  %v957 = vpop.f32.mrf.mxu0
  %v958 = vadd.f32 %v873, %v957
  %v959 = vpop.f32.mrf.mxu0
  %v960 = vpop.f32.mrf.mxu0
  %v961 = vpop.f32.mrf.mxu0
  %962 = vdwg.mxu0
  %963 = vst [vmem:[%s7] sm:$0xff] %v958
  // Predicated region
  $region30: #{fir_ccf_forward.1} parent=0 // pred_check
    _
  $region31: #{fir_ccf_forward.1} parent=0 // pred_check_branch
    %965 = sbr.rel (0) target = $region33
  $region32: #{fir_ccf_forward.1} parent=0 // pred_region
    _
  $region33: #{fir_ccf_forward.1} parent=0 // pred_fallthru
    _
  // Predicated region
  $region34: #{fir_ccf_forward.1} parent=0 // pred_check
    _
  $region35: #{fir_ccf_forward.1} parent=0 // pred_check_branch
    %967 = sbr.rel (0) target = $region37
  $region36: #{fir_ccf_forward.1} parent=0 // pred_region
    _
  $region37: #{fir_ccf_forward.1} parent=0 // pred_fallthru
    _

</llo_original>
